<compile_context>
chip_gen: v7x
topology: tpu7x:2x2x1
jax: 0.10.0
libtpu: 0.0.40
codegen_flags: <defaults>
</compile_context>

<pallas_src>
import jax
import jax.numpy as jnp
import numpy as np
from jax.experimental import pallas as pl
from jax.experimental.pallas import tpu as pltpu


def _round_up(a: int, b: int) -> int:
    return (a + b - 1) // b * b


# ------------------------------ Pallas kernel ---------------------------------
def _make_rmsnorm_kernel(eps: float, d: int, g: int):
    """Kernel over a (rows, g*d) lane-dense block; g original rows per slab row."""
    inv_d = 1.0 / float(d)

    def kernel(x_ref, w_ref, o_ref):
        xf = x_ref[...].astype(jnp.float32)     # (rows, g*d) f32 working copy
        wf = w_ref[...]                         # (1, g*d) float32 gain (resident)
        if g == 1:
            ms = jnp.mean(xf * xf, axis=-1, keepdims=True)   # XLU cross-lane reduce
            inv = jax.lax.rsqrt(ms + eps)                    # EUP rsqrt (free slot)
            o_ref[...] = (xf * inv * wf).astype(o_ref.dtype)  # single downcast
        else:
            # Lane-packed narrow-D path: g segments of d features per packed row.
            # Block-diagonal selector matmuls do the segmented reduce / broadcast
            # without any relayout-inducing in-kernel reshape.
            lane = jax.lax.broadcasted_iota(jnp.int32, (g * d, g), 0)
            seg = jax.lax.broadcasted_iota(jnp.int32, (g * d, g), 1)
            sel = (lane // d == seg).astype(jnp.float32)          # (g*d, g)
            seg_t = jax.lax.broadcasted_iota(jnp.int32, (g, g * d), 0)
            lane_t = jax.lax.broadcasted_iota(jnp.int32, (g, g * d), 1)
            sel_t = (lane_t // d == seg_t).astype(jnp.float32)    # (g, g*d)

            ss = jnp.dot(xf * xf, sel, preferred_element_type=jnp.float32)  # (rows, g)
            inv = jax.lax.rsqrt(ss * inv_d + eps)                           # (rows, g)
            inv_full = jnp.dot(inv, sel_t, preferred_element_type=jnp.float32)  # (rows, g*d)
            o_ref[...] = (xf * inv_full * wf).astype(o_ref.dtype)

    return kernel


# ------------------------------ wrapper ---------------------------------------
def rmsnorm_pallas(x, weight, *, eps: float = 1e-5):
    """RMSNorm over the last dim of `x` with per-feature gain `weight` (shape (D,))."""
    orig_shape = x.shape
    D = x.shape[-1]
    x2 = x.reshape(-1, D)                     # lane-dense 2-D slab (free reshape)
    N = x2.shape[0]

    itemsize = x.dtype.itemsize
    sub_mult = max(8, 32 // itemsize)         # 8 (f32) / 16 (bf16) / 32 (int8/fp8)

    # --- lane packing for narrow D: G original rows per 128-lane slab row -----
    if D < 128 and 128 % D == 0:
        G = 128 // D
    else:
        G = 1
    Np = _round_up(N, G)
    if Np != N:
        x2 = jnp.pad(x2, ((0, Np - N), (0, 0)))
    rows = Np // G
    Dp = G * D
    xp = x2.reshape(rows, Dp)

    # --- block sizing: bytes-per-tile target, VMEM-budget aware ---------------
    row_bytes = Dp * itemsize
    target_tile_bytes = 4 * 1024 * 1024       # ~4 MiB of x per tile
    block_rows = max(sub_mult,
                     (target_tile_bytes // row_bytes) // sub_mult * sub_mult)
    # v7x: guarantee >= 2 grid steps when there is enough work, so the
    # "parallel" axis shards across both TensorCores (cheap on 1-TC chips).
    if rows >= 2 * sub_mult:
        block_rows = min(block_rows, _round_up(pl.cdiv(rows, 2), sub_mult))
    block_rows = min(block_rows, _round_up(rows, sub_mult))

    # Pad rows so the grid divides evenly; zero rows normalize to finite values
    # (rsqrt(eps)) and are sliced off below.
    rows_p = _round_up(rows, block_rows)
    if rows_p != rows:
        xp = jnp.pad(xp, ((0, rows_p - rows), (0, 0)))
    grid = (rows_p // block_rows,)

    # VMEM budget: 2x double-buffered x tile + 2x out tile + f32 upcast temp of
    # the block, plus ~50% headroom.  With the 4 MiB tile target this stays
    # <= ~40 MiB, inside v7x's 64 MiB/TC and above the 16/32 MiB scoped defaults.
    tile_bytes = block_rows * row_bytes
    f32_tile_bytes = block_rows * Dp * 4
    vmem_limit = int(min(96 * 1024 * 1024,
                         max(32 * 1024 * 1024,
                             (4 * tile_bytes + 2 * f32_tile_bytes) * 3 // 2)))

    # Weight stays float32 (single rounding at the final store); tiled G times so
    # each packed segment sees the full (D,) gain.
    w2 = jnp.tile(weight.astype(jnp.float32).reshape(1, D), (1, G))   # (1, Dp)

    out = pl.pallas_call(
        _make_rmsnorm_kernel(eps, D, G),
        out_shape=jax.ShapeDtypeStruct((rows_p, Dp), x.dtype),
        grid_spec=pltpu.PrefetchScalarGridSpec(
            num_scalar_prefetch=0,
            grid=grid,
            in_specs=[
                pl.BlockSpec((block_rows, Dp), lambda i: (i, 0)),   # x rows
                pl.BlockSpec((1, Dp), lambda i: (0, 0)),            # weight (resident)
            ],
            out_specs=pl.BlockSpec((block_rows, Dp), lambda i: (i, 0)),
        ),
        compiler_params=pltpu.CompilerParams(
            dimension_semantics=("parallel",),
            vmem_limit_bytes=vmem_limit,
        ),
    )(xp, w2)

    out = out[:rows].reshape(Np, D)[:N]
    return out.reshape(orig_shape)


# ------------------------------ reference -------------------------------------
def rmsnorm_reference(x, weight, eps=1e-5):
    xf = x.astype(jnp.float32)
    inv = jax.lax.rsqrt(jnp.mean(xf * xf, axis=-1, keepdims=True) + eps)
    return (xf * inv * weight.astype(jnp.float32)).astype(x.dtype)


# ----------------------------------- main --------------------------------------
if __name__ == "__main__":
    key = jax.random.PRNGKey(0)
    kx, kw, kx2, kw2, kx3, kw3 = jax.random.split(key, 6)
    eps = 1e-5

    # Case 1: lane-dense feature dim (D = 128); exercises the >=2 grid-step path.
    B, S, D = 2, 8, 128
    x = jax.random.normal(kx, (B, S, D), jnp.float32)
    weight = 1.0 + 0.1 * jax.random.normal(kw, (D,), jnp.float32)
    out = jax.block_until_ready(rmsnorm_pallas(x, weight, eps=eps))
    ref = rmsnorm_reference(x, weight, eps)
    np.testing.assert_allclose(np.asarray(out), np.asarray(ref), rtol=1e-5, atol=1e-5)

    # Case 2: narrow feature dim (D = 32, the original model dim); exercises the
    # lane-packed (G = 4) path with full 128-lane stores.
    B2, S2, D2 = 4, 8, 32
    x2 = jax.random.normal(kx2, (B2, S2, D2), jnp.float32)
    weight2 = 1.0 + 0.1 * jax.random.normal(kw2, (D2,), jnp.float32)
    out2 = jax.block_until_ready(rmsnorm_pallas(x2, weight2, eps=eps))
    ref2 = rmsnorm_reference(x2, weight2, eps)
    np.testing.assert_allclose(np.asarray(out2), np.asarray(ref2), rtol=1e-5, atol=1e-5)

    # Case 3: ragged row count + D neither >=128 nor dividing 128; exercises the
    # padding / tail handling (no divisibility assumptions).
    B3, S3, D3 = 3, 7, 96
    x3 = jax.random.normal(kx3, (B3, S3, D3), jnp.float32)
    weight3 = 1.0 + 0.1 * jax.random.normal(kw3, (D3,), jnp.float32)
    out3 = jax.block_until_ready(rmsnorm_pallas(x3, weight3, eps=eps))
    ref3 = rmsnorm_reference(x3, weight3, eps)
    np.testing.assert_allclose(np.asarray(out3), np.asarray(ref3), rtol=1e-5, atol=1e-5)

    print("KERNEL_OK")
</pallas_src>

<mosaic_0001>
module attributes {stable_mosaic.version = 11 : i64} {
  func.func @kernel(%arg0: i32, %arg1: memref<8x128xf32, #tpu.memory_space<vmem>>, %arg2: memref<1x128xf32, #tpu.memory_space<vmem>>, %arg3: memref<8x128xf32, #tpu.memory_space<vmem>>) attributes {dimension_semantics = [#tpu.dimension_semantics<parallel>], iteration_bounds = array<i64: 2>, scalar_prefetch = 0 : i64, scratch_operands = 0 : i64, tpu.core_type = #tpu.core_type<tc>, window_params = [{transform_indices = @transform_0, window_bounds = array<i64: 8, 128>}, {pipeline_mode = #tpu.pipeline_mode<synchronous>, transform_indices = @transform_1, window_bounds = array<i64: 1, 128>}, {transform_indices = @transform_2, window_bounds = array<i64: 8, 128>}]} {
    %c0 = arith.constant 0 : index
    %c0_0 = arith.constant 0 : index
    %0 = vector.load %arg1[%c0, %c0_0] : memref<8x128xf32, #tpu.memory_space<vmem>>, vector<8x128xf32>
    %c0_1 = arith.constant 0 : index
    %c0_2 = arith.constant 0 : index
    %1 = vector.load %arg2[%c0_1, %c0_2] : memref<1x128xf32, #tpu.memory_space<vmem>>, vector<1x128xf32>
    %2 = arith.mulf %0, %0 : vector<8x128xf32>
    %cst = arith.constant dense<0.000000e+00> : vector<8xf32>
    %3 = vector.multi_reduction <add>, %2, %cst [1] : vector<8x128xf32> to vector<8xf32>
    %4 = vector.shape_cast %3 : vector<8xf32> to vector<8x1xf32>
    %cst_3 = arith.constant 1.280000e+02 : f32
    %5 = vector.broadcast %cst_3 : f32 to vector<8x1xf32>
    %6 = arith.divf %4, %5 : vector<8x1xf32>
    %cst_4 = arith.constant 9.99999974E-6 : f32
    %7 = vector.broadcast %cst_4 : f32 to vector<8x1xf32>
    %8 = arith.addf %6, %7 : vector<8x1xf32>
    %9 = math.rsqrt %8 : vector<8x1xf32>
    %10 = vector.broadcast %9 : vector<8x1xf32> to vector<8x128xf32>
    %11 = arith.mulf %0, %10 : vector<8x128xf32>
    %12 = vector.broadcast %1 : vector<1x128xf32> to vector<8x128xf32>
    %13 = arith.mulf %11, %12 : vector<8x128xf32>
    %c0_5 = arith.constant 0 : index
    %c0_6 = arith.constant 0 : index
    %14 = vector.load %arg3[%c0_5, %c0_6] : memref<8x128xf32, #tpu.memory_space<vmem>>, vector<8x128xf32>
    tpu.vector_store %arg3[%c0_5, %c0_6], %13 {strides = array<i32>} : memref<8x128xf32, #tpu.memory_space<vmem>>, vector<8x128xf32>,
    return
  }
  func.func @transform_0(%arg0: i32) -> (i32, i32) {
    %c0_i32 = arith.constant 0 : i32
    %c0_i32_0 = arith.constant 0 : i32
    return %arg0, %c0_i32 : i32, i32
  }
  func.func @transform_1(%arg0: i32) -> (i32, i32) {
    %c0_i32 = arith.constant 0 : i32
    %c0_i32_0 = arith.constant 0 : i32
    %c0_i32_1 = arith.constant 0 : i32
    return %c0_i32, %c0_i32_0 : i32, i32
  }
  func.func @transform_2(%arg0: i32) -> (i32, i32) {
    %c0_i32 = arith.constant 0 : i32
    %c0_i32_0 = arith.constant 0 : i32
    return %arg0, %c0_i32 : i32, i32
  }
}

</mosaic_0001>

<llo_original>
// kernel: tpu_custom_call.1
$region0: #{tpu_custom_call.1}
  #allocation0 [shape = 'u32[]', space=smem, size = 0x4, offset = 0x4, fixed_abs, tag = 'smem constant byte address 0x4 - core index']
  #allocation1 [shape = 'u32[144,128]{1,0:T(1,128)}', space=vmem, size = 0x12000, scoped, tag = 'internal scratch']
  %s0 = inlined_call_operand.hbm [shape: f32[16,128], index: 0, kind: input, shape index: {}]
  %s1 = inlined_call_operand.vmem [shape: f32[1,128], index: 1, kind: input, shape index: {}]
  %s2 = inlined_call_operand.hbm [shape: f32[16,128], index: 2, kind: output, shape index: {}]
  %s3 = sld [smem:[#allocation0]]
  $region45: #{tpu_custom_call.1} parent=0
    _
  %s5 = ssub.s32 1, %s3
  %s6 = scalar_select 0, %s5, %s3
  $region1: #{tpu_custom_call.1} parent=0
    #allocation2 [shape = 'u8[8192]{0}', space=vmem, size = 0x2000, scoped, tag = 'input window, operand 0']
    #allocation3 [shape = 's32[2]{0}', space=sflag, size = 0x8, scoped, tag = 'scoped memory for tpu_custom_call.1']
    #allocation4 [shape = 's32[2]{0}', space=sflag, size = 0x8, scoped, tag = 'scoped memory for tpu_custom_call.1']
    #allocation5 [shape = 'u8[8192]{0}', space=vmem, size = 0x2000, scoped, tag = 'output window, operand 0']
    %7 = vsyncpa [#allocation3], 0
    %s8 = scalar_lea.sflag [#allocation3], 1
    %9 = vsyncpa %s8, 0
    %10 = vsyncpa [#allocation4], 0
    %s11 = scalar_lea.sflag [#allocation4], 1
    %12 = vsyncpa %s11, 0
    loop: start=0, step=1, limit=4
    $region2: #{tpu_custom_call.1} parent=1 // loop_pre_header
      _
    $region3: #{tpu_custom_call.1} parent=1 // loop_header
      %s14 = sphi 0, %s18
      %p15 = scmp.ge.s32.totalorder %s14, 4
      %s24 = sphi 0, %s26
      %s27 = sphi 0, %s24
      %s28 = sphi 0, %s27
      %s44 = sphi 0, %s28
      %s48 = sphi 0, %s48
      %s50 = sphi 0, %s48
      %s51 = sphi 0, %s50
      %s65 = sphi 0, %s51
      %s71 = sphi 0, %s73
      %s74 = sphi 0, %s71
      %s75 = sphi 0, %s74
      %s91 = sphi 0, %s75
    $region4: #{tpu_custom_call.1} parent=1 // loop_header_branch
      %17 = sbr.rel (%p15) target = $region8
    $region5: #{tpu_custom_call.1} parent=1 // loop_body
      %s19 = ssub.s32 %s14, 1
      %s20 = ssub.s32 %s14, 2
      %s21 = sadd.s32 %s14, 1
      %s22 = ssub.s32 %s14, %s21
      %p23 = scmp.eq.s32.totalorder %s22, 0
      %s25 = sadd.s32 %s24, 1
      %s26 = scalar_select %p23, %s24, %s25
      %p29 = pneg %p23
      %p30 = scmp.eq.s32.totalorder %s14, 1
      %p31 = por %p29, %p30
      %p32 = scmp.ne.s32.totalorder %s24, %s27
      %p33 = scmp.eq.s32.totalorder %s14, 0
      %p34 = por %p32, %p33
      %p35 = scmp.ne.s32.totalorder %s24, %s27
      %p36 = scmp.eq.s32.totalorder %s19, 1
      %p37 = por %p35, %p36
      %p38 = scmp.ne.s32.totalorder %s27, %s28
      %p39 = scmp.eq.s32.totalorder %s19, 0
      %p40 = por %p38, %p39
      %p41 = scmp.ne.s32.totalorder %s27, %s28
      %p42 = scmp.eq.s32.totalorder %s20, 1
      %p43 = por %p41, %p42
      %p45 = scmp.ne.s32.totalorder %s28, %s44
      %p46 = scmp.eq.s32.totalorder %s20, 0
      %p47 = por %p45, %p46
      %s49 = sadd.s32 %s48, 1
      %p52 = scmp.eq.s32.totalorder %s14, 1
      %p53 = scmp.ne.s32.totalorder %s48, %s50
      %p54 = scmp.eq.s32.totalorder %s14, 0
      %p55 = por %p53, %p54
      %p56 = scmp.ne.s32.totalorder %s48, %s50
      %p57 = scmp.eq.s32.totalorder %s19, 1
      %p58 = por %p56, %p57
      %p59 = scmp.ne.s32.totalorder %s50, %s51
      %p60 = scmp.eq.s32.totalorder %s19, 0
      %p61 = por %p59, %p60
      %p62 = scmp.ne.s32.totalorder %s50, %s51
      %p63 = scmp.eq.s32.totalorder %s20, 1
      %p64 = por %p62, %p63
      %p66 = scmp.ne.s32.totalorder %s51, %s65
      %p67 = scmp.eq.s32.totalorder %s20, 0
      %p68 = por %p66, %p67
      %s69 = ssub.s32 %s14, %s21
      %p70 = scmp.eq.s32.totalorder %s69, 0
      %s72 = sadd.s32 %s71, 1
      %s73 = scalar_select %p70, %s71, %s72
      %p76 = pneg %p70
      %p77 = scmp.eq.s32.totalorder %s14, 1
      %p78 = por %p76, %p77
      %p79 = scmp.ne.s32.totalorder %s71, %s74
      %p80 = scmp.eq.s32.totalorder %s14, 0
      %p81 = por %p79, %p80
      %p82 = scmp.ne.s32.totalorder %s71, %s74
      %p83 = scmp.eq.s32.totalorder %s19, 1
      %p84 = por %p82, %p83
      %p85 = scmp.ne.s32.totalorder %s74, %s75
      %p86 = scmp.eq.s32.totalorder %s19, 0
      %p87 = por %p85, %p86
      %p88 = scmp.ne.s32.totalorder %s74, %s75
      %p89 = scmp.eq.s32.totalorder %s20, 1
      %p90 = por %p88, %p89
      %p92 = scmp.ne.s32.totalorder %s75, %s91
      %p93 = scmp.eq.s32.totalorder %s20, 0
      %p94 = por %p92, %p93
      %p95 = scmp.le.s32.totalorder 1, %s14
      %p96 = scmp.lt.s32.totalorder %s14, 3
      %p97 = pnand %p95, %p96
      %p98 = pneg %p97
      // Predicated region
      $region9: #{tpu_custom_call.1} parent=5 // pred_check
        _
      $region10: #{tpu_custom_call.1} parent=5 // pred_check_branch
        %100 = sbr.rel (%p97) target = $region12
      $region11: #{tpu_custom_call.1} parent=5 // pred_region
        %s101 = ssub.s32 %s14, 1
        // Predicated region
        $region13: #{tpu_custom_call.1} parent=11 // pred_check
          %p102 = pneg %p61
        $region14: #{tpu_custom_call.1} parent=11 // pred_check_branch
          %104 = sbr.rel (%p102) target = $region16
        $region15: #{tpu_custom_call.1} parent=11 // pred_region
          _
        $region16: #{tpu_custom_call.1} parent=11 // pred_fallthru
          _
      $region12: #{tpu_custom_call.1} parent=5 // pred_fallthru
        _
      %p105 = scmp.lt.s32.totalorder %s14, 2
      // Predicated region
      $region17: #{tpu_custom_call.1} parent=5 // pred_check
        %p106 = pneg %p105
      $region18: #{tpu_custom_call.1} parent=5 // pred_check_branch
        %108 = sbr.rel (%p106) target = $region20
      $region19: #{tpu_custom_call.1} parent=5 // pred_region
        // Predicated region
        $region21: #{tpu_custom_call.1} parent=19 // pred_check
          %p109 = pneg %p34
        $region22: #{tpu_custom_call.1} parent=19 // pred_check_branch
          %111 = sbr.rel (%p109) target = $region24
        $region23: #{tpu_custom_call.1} parent=19 // pred_region
          %s112 = sand.u32 %s24, 1
          %s113 = scalar_lea.sflag [#allocation3], %s112
          %s114 = sand.u32 %s24, 1
          %s115 = smul.addr %s114, 8
          %s116 = scalar_lea.vmem [#allocation2], %s115
          %s118 = ssub.s32 128, 128
          %119 = vsyncadd %s113, %s118
          %s120 = smul.addr %s14, 128
          %s121 = scalar_lea.hbm %s0, %s120
          %s123 = sshll.u32 %s116, 4
          %s124 = int_to_ptr.vmem [resolvable:$true] %s123
          %126 = dma.hbm_to_vmem [thread:$0]  %s121, 128, %s124, %s113
        $region24: #{tpu_custom_call.1} parent=19 // pred_fallthru
          _
      $region20: #{tpu_custom_call.1} parent=5 // pred_fallthru
        _
      %p127 = scmp.le.s32.totalorder 1, %s14
      %p128 = scmp.lt.s32.totalorder %s14, 3
      %p129 = pnand %p127, %p128
      %p130 = pneg %p129
      // Predicated region
      $region25: #{tpu_custom_call.1} parent=5 // pred_check
        _
      $region26: #{tpu_custom_call.1} parent=5 // pred_check_branch
        %132 = sbr.rel (%p129) target = $region28
      $region27: #{tpu_custom_call.1} parent=5 // pred_region
        %s133 = ssub.s32 %s14, 1
        %s134 = sand.u32 %s27, 1
        %s135 = scalar_lea.sflag [#allocation3], %s134
        %s136 = sand.u32 %s27, 1
        %s137 = smul.addr %s136, 8
        %s138 = scalar_lea.vmem [#allocation2], %s137
        // Predicated region
        $region29: #{tpu_custom_call.1} parent=27 // pred_check
          %p139 = pneg %p40
        $region30: #{tpu_custom_call.1} parent=27 // pred_check_branch
          %141 = sbr.rel (%p139) target = $region32
        $region31: #{tpu_custom_call.1} parent=27 // pred_region
          %142 = dma.done %s135, 128
        $region32: #{tpu_custom_call.1} parent=27 // pred_fallthru
          _
        %s143 = sand.u32 %s27, 1
        %s144 = scalar_lea.sflag [#allocation3], %s143
        %s145 = sand.u32 %s27, 1
        %s146 = smul.addr %s145, 8
        %s147 = scalar_lea.vmem [#allocation2], %s146
        %p148 = pneg %p40
        %p149 = pneg %p37
        %p150 = pneg %p61
        %p151 = pneg %p58
        %p152 = pneg %p87
        %p153 = pneg %p84
        %s154 = sand.u32 %s74, 1
        %s155 = scalar_lea.sflag [#allocation4], %s154
        %s156 = sand.u32 %s74, 1
        %s157 = smul.addr %s156, 8
        %s158 = scalar_lea.vmem [#allocation5], %s157
        %v159 = vld [vmem:[%s138] sm:$0xff]
        %v160 = vld [vmem:[%s1] sm:$0x1]
        %v161 = vmul.f32 %v159, %v159
        %162 = vadd.xlane.f32.xlu0 %v161
        %v163 = vpop.xlane.xlu0 %162
        %v164 = vrcp.pop 128.0
        %v165 = vmul.f32 %v163, %v164
        %v166 = vadd.f32 %v165, 1e-05
        %v167 = vrsqrt.pop %v166
        %v168 = vmul.f32 %v159, %v167
        %v170 = vlaneseq
        %v171 = vshrl.u32 %v170, 7
        %v172 = vsub.s32 0, %v171
        %v173 = vrot.slane %v160, %v172
        %v175 = vmul.f32 %v168, %v173
        %176 = vst [vmem:[%s158] sm:$0xff] %v175
        %s177 = sand.u32 %s74, 1
        %s178 = scalar_lea.sflag [#allocation4], %s177
        %s179 = sand.u32 %s74, 1
        %s180 = smul.addr %s179, 8
        %s181 = scalar_lea.vmem [#allocation5], %s180
        // Predicated region
        $region33: #{tpu_custom_call.1} parent=27 // pred_check
          %p182 = pneg %p84
        $region34: #{tpu_custom_call.1} parent=27 // pred_check_branch
          %184 = sbr.rel (%p182) target = $region36
        $region35: #{tpu_custom_call.1} parent=27 // pred_region
          %s186 = ssub.s32 128, 128
          %187 = vsyncadd %s178, %s186
          %s188 = smul.addr %s19, 128
          %s189 = scalar_lea.hbm %s2, %s188
          %s191 = sshll.u32 %s181, 4
          %s192 = int_to_ptr.vmem [resolvable:$true] %s191
          %194 = dma.vmem_to_hbm [thread:$0]  %s192, 128, %s189, %s178
        $region36: #{tpu_custom_call.1} parent=27 // pred_fallthru
          _
      $region28: #{tpu_custom_call.1} parent=5 // pred_fallthru
        _
      %p195 = scmp.le.s32.totalorder 2, %s14
      // Predicated region
      $region37: #{tpu_custom_call.1} parent=5 // pred_check
        %p196 = pneg %p195
      $region38: #{tpu_custom_call.1} parent=5 // pred_check_branch
        %198 = sbr.rel (%p196) target = $region40
      $region39: #{tpu_custom_call.1} parent=5 // pred_region
        %s199 = ssub.s32 %s14, 2
        // Predicated region
        $region41: #{tpu_custom_call.1} parent=39 // pred_check
          %p200 = pneg %p90
        $region42: #{tpu_custom_call.1} parent=39 // pred_check_branch
          %202 = sbr.rel (%p200) target = $region44
        $region43: #{tpu_custom_call.1} parent=39 // pred_region
          %s203 = sand.u32 %s75, 1
          %s204 = scalar_lea.sflag [#allocation4], %s203
          %s205 = sand.u32 %s75, 1
          %s206 = smul.addr %s205, 8
          %s207 = scalar_lea.vmem [#allocation5], %s206
          %208 = dma.done %s204, 128
        $region44: #{tpu_custom_call.1} parent=39 // pred_fallthru
          _
      $region40: #{tpu_custom_call.1} parent=5 // pred_fallthru
        _
    $region6: #{tpu_custom_call.1} parent=1 // loop_footer
      %s18 = sadd.s32 1, %s14
    $region7: #{tpu_custom_call.1} parent=1 // loop_footer_branch
      %13 = sbr.rel target = $region3
    $region8: #{tpu_custom_call.1} parent=1 // loop_exit
      _
    %209 = vsyncpa [#allocation3], 1
    %s210 = scalar_lea.sflag [#allocation3], 1
    %211 = vsyncpa %s210, 1
    %212 = vsyncpa [#allocation4], 1
    %s213 = scalar_lea.sflag [#allocation4], 1
    %214 = vsyncpa %s213, 1

</llo_original>
